<compile_context>
chip_gen: v6e
topology: v6e:2x2x1
jax: 0.10.0
libtpu: 0.0.40
codegen_flags: <defaults>
</compile_context>

<pallas_src>
import jax
import jax.numpy as jnp
from jax import lax
from jax.experimental import pallas as pl
from jax.experimental.pallas import tpu as pltpu

N_NODES = 4        # 4 labels / graph nodes
IN_DIM = 4         # LabelEmbeddingMLP input_dim
MLP_H1 = 128
MLP_H2 = 64
HIDDEN_DIM = 32    # LabelGCN hidden_dim == MLP embedding_dim == GCN input_dim
GCN_HIDDEN = 32    # GCNModel hidden_dim
GCN_OUT = 4        # GCNModel output_dim
EPS = 1e-8         # F.cosine_similarity eps
SIM_THRESH = 0.5

TB_MAX = 1024      # batch rows per grid step (M of the matmuls)
ROW_ALIGN = 16     # bf16 emb output => sublane multiple of 16


# ------------------------------------------------------------------ kernel --
def fused_mlp_gcn_kernel(x_ref, a1_ref, b1_ref, a2_ref, b2_ref, a3_ref, b3_ref,
                         m1_ref, c1_ref, m2_ref, c2_ref, emb_ref, out_ref):
    """One batch tile: node-flattened MLP + GCN as a chain of 2-D matmuls.

    x_ref:   (TB, 16)   = flat(x[b, n, d])            n*4 + d
    a*_ref:  block-diagonal MLP weights kron(I_g, W*)  (bf16)
             a2 may arrive as kron(I2, w2) (v5e split) or kron(I4, w2) (dense)
    m*_ref:  GCN weights with aggregation folded in,   kron(norm^T, Wg*)
    b*/c*:   per-node-tiled biases                     (f32)
    emb_ref: (TB, 128)  = flat(emb[b, n, f])           (bf16 by default)
    out_ref: (TB, 16)   = flat(out[b, n, f])
    """
    cd = a1_ref.dtype                                  # MXU compute dtype
    xb = x_ref[...].astype(cd)                                         # (TB, 16)

    # LabelEmbeddingMLP layer 1 (per node, block-diagonal weights).
    h = jnp.dot(xb, a1_ref[...], preferred_element_type=jnp.float32) + b1_ref[...]
    h = jnp.maximum(h, 0.0)                                            # (TB, 512)

    # Layer 2: dense kron(I4,w2) on 256-wide MXUs, two kron(I2,w2) halves on v5e.
    k2 = a2_ref.shape[0]
    nblk = (N_NODES * MLP_H1) // k2                    # 1 (dense) or 2 (split)
    if nblk == 1:
        h2 = jnp.dot(h.astype(cd), a2_ref[...],
                     preferred_element_type=jnp.float32)
    else:
        h2 = jnp.concatenate(
            [jnp.dot(h[:, s * k2:(s + 1) * k2].astype(cd), a2_ref[...],
                     preferred_element_type=jnp.float32)
             for s in range(nblk)], axis=-1)
    h2 = jnp.maximum(h2 + b2_ref[...], 0.0)                            # (TB, 256)

    # Layer 3 -> embeddings.
    emb = jnp.dot(h2.astype(cd), a3_ref[...],
                  preferred_element_type=jnp.float32) + b3_ref[...]    # (TB, 128)
    emb_ref[...] = emb.astype(emb_ref.dtype)

    # GCN layer 1: flat(norm @ E @ Wg1) = flat(E) @ kron(norm^T, Wg1)
    g = jnp.dot(emb.astype(cd), m1_ref[...],
                preferred_element_type=jnp.float32) + c1_ref[...]
    g = jnp.maximum(g, 0.0)                                            # (TB, 128)
    # GCN layer 2
    o = jnp.dot(g.astype(cd), m2_ref[...],
                preferred_element_type=jnp.float32) + c2_ref[...]      # (TB, 16)
    out_ref[...] = o.astype(out_ref.dtype)


# --------------------------------------------------- adjacency (plain JAX) --
def _cosine_adjacency_norm(x):
    """Batch-union adjacency -> D^-1/2 (A + I) D^-1/2, computed once (tiny)."""
    dots = jnp.einsum('bid,bjd->bij', x, x)
    nrm = jnp.maximum(jnp.sqrt(jnp.sum(x * x, axis=-1)), EPS)   # per-row clamp,
    sim = dots / (nrm[:, :, None] * nrm[:, None, :])            # like PyTorch
    eye = jnp.eye(N_NODES, dtype=jnp.float32)
    adj_any = jnp.any(sim > SIM_THRESH, axis=0).astype(jnp.float32)  # shared graph
    a = adj_any * (1.0 - eye)           # networkx loop: only i < j (no self edges)
    a_hat = a + eye                     # GCNConv adds self loops
    deg = jnp.sum(a_hat, axis=-1)
    dinv = lax.rsqrt(deg)               # deg >= 1
    return a_hat * dinv[:, None] * dinv[None, :]


# ----------------------------------------------------------------- helpers --
def _round_up(v, m):
    return ((v + m - 1) // m) * m


def _choose_batch_tile(b):
    """Batch tile size + padded batch. >=2 even grid steps when possible (v7x)."""
    b_al = max(ROW_ALIGN, _round_up(b, ROW_ALIGN))
    steps = max(1, -(-b_al // TB_MAX))
    if b_al > ROW_ALIGN:
        steps = max(steps, 2)           # give both v7x TensorCores work
        if steps % 2:
            steps += 1                  # even split across the two cores
    tb = _round_up(-(-b_al // steps), ROW_ALIGN)
    return tb, tb * steps


def _default_split_l2():
    """Split the layer-2 block-diagonal matmul only on v5e's 128-wide MXU."""
    try:
        kind = jax.devices()[0].device_kind.lower()
    except Exception:
        return False
    return ("v5e" in kind) or ("v5 lite" in kind) or ("v5lite" in kind)


# --------------------------------------------------- parameter precompute --
def prepare_params(params, *, compute_dtype=jnp.bfloat16, split_mlp_l2=None):
    """Parameter-only precompute, hoisted out of the per-call path."""
    (w1, b1, w2, b2, w3, b3, wg1, bg1, wg2, bg2) = params
    if split_mlp_l2 is None:
        split_mlp_l2 = _default_split_l2()
    nblk = 2 if split_mlp_l2 else 1

    eye4 = jnp.eye(N_NODES, dtype=jnp.float32)
    eye_l2 = jnp.eye(N_NODES // nblk, dtype=jnp.float32)
    # Block-diagonal MLP weights: act on node-flattened rows (B, 4*D).
    a1 = jnp.kron(eye4, w1).astype(compute_dtype)                 # (16, 512)
    a2 = jnp.kron(eye_l2, w2).astype(compute_dtype)               # (512,256)|(256,128)
    a3 = jnp.kron(eye4, w3).astype(compute_dtype)                 # (256, 128)
    # Per-node-tiled biases (stay f32; added to f32 accumulators).
    b1t = jnp.tile(b1, (1, N_NODES)).astype(jnp.float32)          # (1, 512)
    b2t = jnp.tile(b2, (1, N_NODES)).astype(jnp.float32)          # (1, 256)
    b3t = jnp.tile(b3, (1, N_NODES)).astype(jnp.float32)          # (1, 128)
    c1t = jnp.tile(bg1, (1, N_NODES)).astype(jnp.float32)         # (1, 128)
    c2t = jnp.tile(bg2, (1, N_NODES)).astype(jnp.float32)         # (1, 16)
    return dict(a1=a1, b1t=b1t, a2=a2, b2t=b2t, a3=a3, b3t=b3t,
                c1t=c1t, c2t=c2t,
                wg1=wg1.astype(jnp.float32), wg2=wg2.astype(jnp.float32))


# ----------------------------------------------------------------- wrapper --
def label_gcn_forward(x, prep, *, emb_dtype=jnp.bfloat16):
    B = x.shape[0]
    cd = prep["a1"].dtype

    # Shared normalized adjacency (data-dependent 4x4), hoisted out of the grid.
    norm = _cosine_adjacency_norm(x.astype(jnp.float32))
    # GCN weights with the (shared) aggregation folded in (per-call, data-dep).
    m1 = jnp.kron(norm.T, prep["wg1"]).astype(cd)                 # (128, 128)
    m2 = jnp.kron(norm.T, prep["wg2"]).astype(cd)                 # (128, 16)

    a1, b1t = prep["a1"], prep["b1t"]
    a2, b2t = prep["a2"], prep["b2t"]
    a3, b3t = prep["a3"], prep["b3t"]
    c1t, c2t = prep["c1t"], prep["c2t"]

    # Node-flattened, lane-friendly input; pad batch to a whole number of tiles.
    x_flat = x.reshape(B, N_NODES * IN_DIM).astype(jnp.float32)
    tb, bp = _choose_batch_tile(B)
    if bp != B:
        x_flat = jnp.pad(x_flat, ((0, bp - B), (0, 0)))
    grid = (bp // tb,)

    const2 = lambda i: (0, 0)
    row_map = lambda i: (i, 0)

    weights = (a1, b1t, a2, b2t, a3, b3t, m1, c1t, m2, c2t)
    weight_bytes = sum(int(w.size) * w.dtype.itemsize for w in weights)
    emb_itemsize = jnp.dtype(emb_dtype).itemsize
    cost = pl.CostEstimate(
        flops=2 * 190464 * bp,
        transcendentals=0,
        bytes_accessed=bp * (64 + 128 * emb_itemsize + 64) + weight_bytes)

    emb_flat, out_flat = pl.pallas_call(
        fused_mlp_gcn_kernel,
        out_shape=(
            jax.ShapeDtypeStruct((bp, N_NODES * HIDDEN_DIM), emb_dtype),
            jax.ShapeDtypeStruct((bp, N_NODES * GCN_OUT), jnp.float32),
        ),
        grid_spec=pltpu.PrefetchScalarGridSpec(
            num_scalar_prefetch=0, grid=grid,
            in_specs=[
                pl.BlockSpec((tb, N_NODES * IN_DIM), row_map),
                pl.BlockSpec(a1.shape, const2),
                pl.BlockSpec(b1t.shape, const2),
                pl.BlockSpec(a2.shape, const2),
                pl.BlockSpec(b2t.shape, const2),
                pl.BlockSpec(a3.shape, const2),
                pl.BlockSpec(b3t.shape, const2),
                pl.BlockSpec(m1.shape, const2),
                pl.BlockSpec(c1t.shape, const2),
                pl.BlockSpec(m2.shape, const2),
                pl.BlockSpec(c2t.shape, const2),
            ],
            out_specs=[
                pl.BlockSpec((tb, N_NODES * HIDDEN_DIM), row_map),
                pl.BlockSpec((tb, N_NODES * GCN_OUT), row_map),
            ]),
        compiler_params=pltpu.CompilerParams(
            dimension_semantics=("parallel",),
            vmem_limit_bytes=32 * 1024 * 1024),
        cost_estimate=cost,
    )(x_flat, a1, b1t, a2, b2t, a3, b3t, m1, c1t, m2, c2t)

    emb = emb_flat[:B].reshape(B, N_NODES, HIDDEN_DIM)
    out = out_flat[:B].reshape(B, N_NODES, GCN_OUT)
    return emb, out


# ---------------------------------------------------------- pure-JAX check --
def label_gcn_reference(x, params):
    (w1, b1, w2, b2, w3, b3, wg1, bg1, wg2, bg2) = params
    h = jax.nn.relu(x @ w1 + b1)
    h = jax.nn.relu(h @ w2 + b2)
    emb = h @ w3 + b3                                        # (B, 4, H)
    norm = _cosine_adjacency_norm(x)
    g = jax.nn.relu(jnp.einsum('ij,bjf->bif', norm, emb @ wg1) + bg1)
    out = jnp.einsum('ij,bjf->bif', norm, g @ wg2) + bg2     # (B, 4, 4)
    return emb, out


def init_params(key):
    ks = jax.random.split(key, 10)
    scale = 0.1
    w1 = jax.random.normal(ks[0], (IN_DIM, MLP_H1), jnp.float32) * scale
    b1 = jax.random.normal(ks[1], (1, MLP_H1), jnp.float32) * scale
    w2 = jax.random.normal(ks[2], (MLP_H1, MLP_H2), jnp.float32) * scale
    b2 = jax.random.normal(ks[3], (1, MLP_H2), jnp.float32) * scale
    w3 = jax.random.normal(ks[4], (MLP_H2, HIDDEN_DIM), jnp.float32) * scale
    b3 = jax.random.normal(ks[5], (1, HIDDEN_DIM), jnp.float32) * scale
    wg1 = jax.random.normal(ks[6], (HIDDEN_DIM, GCN_HIDDEN), jnp.float32) * scale
    bg1 = jax.random.normal(ks[7], (1, GCN_HIDDEN), jnp.float32) * scale
    wg2 = jax.random.normal(ks[8], (GCN_HIDDEN, GCN_OUT), jnp.float32) * scale
    bg2 = jax.random.normal(ks[9], (1, GCN_OUT), jnp.float32) * scale
    return (w1, b1, w2, b2, w3, b3, wg1, bg1, wg2, bg2)


if __name__ == "__main__":
    root = jax.random.PRNGKey(0)
    k_params, k_x = jax.random.split(root)
    params = init_params(k_params)
    prep = prepare_params(params)          # parameter-only precompute, hoisted

    B = 2
    x = jax.random.normal(k_x, (B, N_NODES, IN_DIM), jnp.float32)

    fwd = jax.jit(label_gcn_forward)
    emb, out = fwd(x, prep)
    jax.block_until_ready((emb, out))

    assert emb.shape == (B, N_NODES, HIDDEN_DIM)
    assert out.shape == (B, N_NODES, GCN_OUT)

    # Loose tolerance: bf16 MXU operands / bf16 emb output with f32 accumulation.
    emb_ref, out_ref = label_gcn_reference(x, params)
    assert jnp.max(jnp.abs(emb.astype(jnp.float32) - emb_ref)) < 5e-2
    assert jnp.max(jnp.abs(out - out_ref)) < 5e-2

    print("KERNEL_OK")
</pallas_src>

<mosaic_0001>
module attributes {stable_mosaic.version = 11 : i64} {
  func.func @fused_mlp_gcn_kernel(%arg0: i32, %arg1: memref<16x16xf32, #tpu.memory_space<vmem>>, %arg2: memref<16x512xbf16, #tpu.memory_space<vmem>>, %arg3: memref<1x512xf32, #tpu.memory_space<vmem>>, %arg4: memref<512x256xbf16, #tpu.memory_space<vmem>>, %arg5: memref<1x256xf32, #tpu.memory_space<vmem>>, %arg6: memref<256x128xbf16, #tpu.memory_space<vmem>>, %arg7: memref<1x128xf32, #tpu.memory_space<vmem>>, %arg8: memref<128x128xbf16, #tpu.memory_space<vmem>>, %arg9: memref<1x128xf32, #tpu.memory_space<vmem>>, %arg10: memref<128x16xbf16, #tpu.memory_space<vmem>>, %arg11: memref<1x16xf32, #tpu.memory_space<vmem>>, %arg12: memref<16x128xbf16, #tpu.memory_space<vmem>>, %arg13: memref<16x16xf32, #tpu.memory_space<vmem>>) attributes {dimension_semantics = [#tpu.dimension_semantics<parallel>], iteration_bounds = array<i64: 1>, scalar_prefetch = 0 : i64, scratch_operands = 0 : i64, tpu.core_type = #tpu.core_type<tc>, window_params = [{transform_indices = @transform_0, window_bounds = array<i64: 16, 16>}, {pipeline_mode = #tpu.pipeline_mode<synchronous>, transform_indices = @transform_1, window_bounds = array<i64: 16, 512>}, {pipeline_mode = #tpu.pipeline_mode<synchronous>, transform_indices = @transform_2, window_bounds = array<i64: 1, 512>}, {pipeline_mode = #tpu.pipeline_mode<synchronous>, transform_indices = @transform_3, window_bounds = array<i64: 512, 256>}, {pipeline_mode = #tpu.pipeline_mode<synchronous>, transform_indices = @transform_4, window_bounds = array<i64: 1, 256>}, {pipeline_mode = #tpu.pipeline_mode<synchronous>, transform_indices = @transform_5, window_bounds = array<i64: 256, 128>}, {pipeline_mode = #tpu.pipeline_mode<synchronous>, transform_indices = @transform_6, window_bounds = array<i64: 1, 128>}, {pipeline_mode = #tpu.pipeline_mode<synchronous>, transform_indices = @transform_7, window_bounds = array<i64: 128, 128>}, {pipeline_mode = #tpu.pipeline_mode<synchronous>, transform_indices = @transform_8, window_bounds = array<i64: 1, 128>}, {pipeline_mode = #tpu.pipeline_mode<synchronous>, transform_indices = @transform_9, window_bounds = array<i64: 128, 16>}, {pipeline_mode = #tpu.pipeline_mode<synchronous>, transform_indices = @transform_10, window_bounds = array<i64: 1, 16>}, {transform_indices = @transform_11, window_bounds = array<i64: 16, 128>}, {transform_indices = @transform_12, window_bounds = array<i64: 16, 16>}]} {
    %c0 = arith.constant 0 : index
    %c0_0 = arith.constant 0 : index
    %0 = vector.load %arg1[%c0, %c0_0] : memref<16x16xf32, #tpu.memory_space<vmem>>, vector<16x16xf32>
    %1 = arith.truncf %0 : vector<16x16xf32> to vector<16x16xbf16>
    %c0_1 = arith.constant 0 : index
    %c0_2 = arith.constant 0 : index
    %2 = vector.load %arg2[%c0_1, %c0_2] : memref<16x512xbf16, #tpu.memory_space<vmem>>, vector<16x512xbf16>
    %cst = arith.constant dense<0.000000e+00> : vector<16x512xf32>
    %3 = tpu.matmul %1, %2, %cst {dimension_numbers = #tpu.dot_dimension_numbers<[1], [0], [0], [1], [0, 0, 1, 1], [], []>} : vector<16x16xbf16>, vector<16x512xbf16>, vector<16x512xf32> -> vector<16x512xf32>
    %c0_3 = arith.constant 0 : index
    %c0_4 = arith.constant 0 : index
    %4 = vector.load %arg3[%c0_3, %c0_4] : memref<1x512xf32, #tpu.memory_space<vmem>>, vector<1x512xf32>
    %5 = vector.broadcast %4 : vector<1x512xf32> to vector<16x512xf32>
    %6 = arith.addf %3, %5 : vector<16x512xf32>
    %cst_5 = arith.constant 0.000000e+00 : f32
    %7 = vector.broadcast %cst_5 : f32 to vector<16x512xf32>
    %8 = arith.maximumf %6, %7 : vector<16x512xf32>
    %9 = arith.truncf %8 : vector<16x512xf32> to vector<16x512xbf16>
    %c0_6 = arith.constant 0 : index
    %c0_7 = arith.constant 0 : index
    %10 = vector.load %arg4[%c0_6, %c0_7] : memref<512x256xbf16, #tpu.memory_space<vmem>>, vector<512x256xbf16>
    %cst_8 = arith.constant dense<0.000000e+00> : vector<16x256xf32>
    %11 = tpu.matmul %9, %10, %cst_8 {dimension_numbers = #tpu.dot_dimension_numbers<[1], [0], [0], [1], [0, 0, 1, 1], [], []>} : vector<16x512xbf16>, vector<512x256xbf16>, vector<16x256xf32> -> vector<16x256xf32>
    %c0_9 = arith.constant 0 : index
    %c0_10 = arith.constant 0 : index
    %12 = vector.load %arg5[%c0_9, %c0_10] : memref<1x256xf32, #tpu.memory_space<vmem>>, vector<1x256xf32>
    %13 = vector.broadcast %12 : vector<1x256xf32> to vector<16x256xf32>
    %14 = arith.addf %11, %13 : vector<16x256xf32>
    %cst_11 = arith.constant 0.000000e+00 : f32
    %15 = vector.broadcast %cst_11 : f32 to vector<16x256xf32>
    %16 = arith.maximumf %14, %15 : vector<16x256xf32>
    %17 = arith.truncf %16 : vector<16x256xf32> to vector<16x256xbf16>
    %c0_12 = arith.constant 0 : index
    %c0_13 = arith.constant 0 : index
    %18 = vector.load %arg6[%c0_12, %c0_13] : memref<256x128xbf16, #tpu.memory_space<vmem>>, vector<256x128xbf16>
    %cst_14 = arith.constant dense<0.000000e+00> : vector<16x128xf32>
    %19 = tpu.matmul %17, %18, %cst_14 {dimension_numbers = #tpu.dot_dimension_numbers<[1], [0], [0], [1], [0, 0, 1, 1], [], []>} : vector<16x256xbf16>, vector<256x128xbf16>, vector<16x128xf32> -> vector<16x128xf32>
    %c0_15 = arith.constant 0 : index
    %c0_16 = arith.constant 0 : index
    %20 = vector.load %arg7[%c0_15, %c0_16] : memref<1x128xf32, #tpu.memory_space<vmem>>, vector<1x128xf32>
    %21 = vector.broadcast %20 : vector<1x128xf32> to vector<16x128xf32>
    %22 = arith.addf %19, %21 : vector<16x128xf32>
    %23 = arith.truncf %22 : vector<16x128xf32> to vector<16x128xbf16>
    %c0_17 = arith.constant 0 : index
    %c0_18 = arith.constant 0 : index
    %24 = vector.load %arg12[%c0_17, %c0_18] : memref<16x128xbf16, #tpu.memory_space<vmem>>, vector<16x128xbf16>
    tpu.vector_store %arg12[%c0_17, %c0_18], %23 {strides = array<i32>} : memref<16x128xbf16, #tpu.memory_space<vmem>>, vector<16x128xbf16>,
    %25 = arith.truncf %22 : vector<16x128xf32> to vector<16x128xbf16>
    %c0_19 = arith.constant 0 : index
    %c0_20 = arith.constant 0 : index
    %26 = vector.load %arg8[%c0_19, %c0_20] : memref<128x128xbf16, #tpu.memory_space<vmem>>, vector<128x128xbf16>
    %cst_21 = arith.constant dense<0.000000e+00> : vector<16x128xf32>
    %27 = tpu.matmul %25, %26, %cst_21 {dimension_numbers = #tpu.dot_dimension_numbers<[1], [0], [0], [1], [0, 0, 1, 1], [], []>} : vector<16x128xbf16>, vector<128x128xbf16>, vector<16x128xf32> -> vector<16x128xf32>
    %c0_22 = arith.constant 0 : index
    %c0_23 = arith.constant 0 : index
    %28 = vector.load %arg9[%c0_22, %c0_23] : memref<1x128xf32, #tpu.memory_space<vmem>>, vector<1x128xf32>
    %29 = vector.broadcast %28 : vector<1x128xf32> to vector<16x128xf32>
    %30 = arith.addf %27, %29 : vector<16x128xf32>
    %cst_24 = arith.constant 0.000000e+00 : f32
    %31 = vector.broadcast %cst_24 : f32 to vector<16x128xf32>
    %32 = arith.maximumf %30, %31 : vector<16x128xf32>
    %33 = arith.truncf %32 : vector<16x128xf32> to vector<16x128xbf16>
    %c0_25 = arith.constant 0 : index
    %c0_26 = arith.constant 0 : index
    %34 = vector.load %arg10[%c0_25, %c0_26] : memref<128x16xbf16, #tpu.memory_space<vmem>>, vector<128x16xbf16>
    %cst_27 = arith.constant dense<0.000000e+00> : vector<16x16xf32>
    %35 = tpu.matmul %33, %34, %cst_27 {dimension_numbers = #tpu.dot_dimension_numbers<[1], [0], [0], [1], [0, 0, 1, 1], [], []>} : vector<16x128xbf16>, vector<128x16xbf16>, vector<16x16xf32> -> vector<16x16xf32>
    %c0_28 = arith.constant 0 : index
    %c0_29 = arith.constant 0 : index
    %36 = vector.load %arg11[%c0_28, %c0_29] : memref<1x16xf32, #tpu.memory_space<vmem>>, vector<1x16xf32>
    %37 = vector.broadcast %36 : vector<1x16xf32> to vector<16x16xf32>
    %38 = arith.addf %35, %37 : vector<16x16xf32>
    %c0_30 = arith.constant 0 : index
    %c0_31 = arith.constant 0 : index
    %39 = vector.load %arg13[%c0_30, %c0_31] : memref<16x16xf32, #tpu.memory_space<vmem>>, vector<16x16xf32>
    tpu.vector_store %arg13[%c0_30, %c0_31], %38 {strides = array<i32>} : memref<16x16xf32, #tpu.memory_space<vmem>>, vector<16x16xf32>,
    return
  }
  func.func @transform_0(%arg0: i32) -> (i32, i32) {
    %c0_i32 = arith.constant 0 : i32
    %c0_i32_0 = arith.constant 0 : i32
    return %arg0, %c0_i32 : i32, i32
  }
  func.func @transform_1(%arg0: i32) -> (i32, i32) {
    %c0_i32 = arith.constant 0 : i32
    %c0_i32_0 = arith.constant 0 : i32
    %c0_i32_1 = arith.constant 0 : i32
    return %c0_i32, %c0_i32_0 : i32, i32
  }
  func.func @transform_2(%arg0: i32) -> (i32, i32) {
    %c0_i32 = arith.constant 0 : i32
    %c0_i32_0 = arith.constant 0 : i32
    %c0_i32_1 = arith.constant 0 : i32
    return %c0_i32, %c0_i32_0 : i32, i32
  }
  func.func @transform_3(%arg0: i32) -> (i32, i32) {
    %c0_i32 = arith.constant 0 : i32
    %c0_i32_0 = arith.constant 0 : i32
    %c0_i32_1 = arith.constant 0 : i32
    return %c0_i32, %c0_i32_0 : i32, i32
  }
  func.func @transform_4(%arg0: i32) -> (i32, i32) {
    %c0_i32 = arith.constant 0 : i32
    %c0_i32_0 = arith.constant 0 : i32
    %c0_i32_1 = arith.constant 0 : i32
    return %c0_i32, %c0_i32_0 : i32, i32
  }
  func.func @transform_5(%arg0: i32) -> (i32, i32) {
    %c0_i32 = arith.constant 0 : i32
    %c0_i32_0 = arith.constant 0 : i32
    %c0_i32_1 = arith.constant 0 : i32
    return %c0_i32, %c0_i32_0 : i32, i32
  }
  func.func @transform_6(%arg0: i32) -> (i32, i32) {
    %c0_i32 = arith.constant 0 : i32
    %c0_i32_0 = arith.constant 0 : i32
    %c0_i32_1 = arith.constant 0 : i32
    return %c0_i32, %c0_i32_0 : i32, i32
  }
  func.func @transform_7(%arg0: i32) -> (i32, i32) {
    %c0_i32 = arith.constant 0 : i32
    %c0_i32_0 = arith.constant 0 : i32
    %c0_i32_1 = arith.constant 0 : i32
    return %c0_i32, %c0_i32_0 : i32, i32
  }
  func.func @transform_8(%arg0: i32) -> (i32, i32) {
    %c0_i32 = arith.constant 0 : i32
    %c0_i32_0 = arith.constant 0 : i32
    %c0_i32_1 = arith.constant 0 : i32
    return %c0_i32, %c0_i32_0 : i32, i32
  }
  func.func @transform_9(%arg0: i32) -> (i32, i32) {
    %c0_i32 = arith.constant 0 : i32
    %c0_i32_0 = arith.constant 0 : i32
    %c0_i32_1 = arith.constant 0 : i32
    return %c0_i32, %c0_i32_0 : i32, i32
  }
  func.func @transform_10(%arg0: i32) -> (i32, i32) {
    %c0_i32 = arith.constant 0 : i32
    %c0_i32_0 = arith.constant 0 : i32
    %c0_i32_1 = arith.constant 0 : i32
    return %c0_i32, %c0_i32_0 : i32, i32
  }
  func.func @transform_11(%arg0: i32) -> (i32, i32) {
    %c0_i32 = arith.constant 0 : i32
    %c0_i32_0 = arith.constant 0 : i32
    return %arg0, %c0_i32 : i32, i32
  }
  func.func @transform_12(%arg0: i32) -> (i32, i32) {
    %c0_i32 = arith.constant 0 : i32
    %c0_i32_0 = arith.constant 0 : i32
    return %arg0, %c0_i32 : i32, i32
  }
}

</mosaic_0001>

<llo_original>
// kernel: label_gcn_forward.1
$region0: #{label_gcn_forward.1}
  #allocation0 [shape = 'u32[]', space=smem, size = 0x4, offset = 0x4, fixed_abs, tag = 'smem constant byte address 0x4 - core index']
  #allocation1 [shape = 'u32[144,128]{1,0:T(1,128)}', space=vmem, size = 0x12000, scoped, tag = 'internal scratch']
  %s0 = inlined_call_operand.vmem [shape: f32[16,16], index: 0, kind: input, shape index: {}]
  %s1 = inlined_call_operand.vmem [shape: bf16[16,512], index: 1, kind: input, shape index: {}]
  %s2 = inlined_call_operand.vmem [shape: f32[1,512], index: 2, kind: input, shape index: {}]
  %s3 = inlined_call_operand.vmem [shape: bf16[512,256], index: 3, kind: input, shape index: {}]
  %s4 = inlined_call_operand.vmem [shape: f32[1,256], index: 4, kind: input, shape index: {}]
  %s5 = inlined_call_operand.vmem [shape: bf16[256,128], index: 5, kind: input, shape index: {}]
  %s6 = inlined_call_operand.vmem [shape: f32[1,128], index: 6, kind: input, shape index: {}]
  %s7 = inlined_call_operand.vmem [shape: bf16[128,128], index: 7, kind: input, shape index: {}]
  %s8 = inlined_call_operand.vmem [shape: f32[1,128], index: 8, kind: input, shape index: {}]
  %s9 = inlined_call_operand.vmem [shape: bf16[128,16], index: 9, kind: input, shape index: {}]
  %s10 = inlined_call_operand.vmem [shape: f32[1,16], index: 10, kind: input, shape index: {}]
  %s11 = inlined_call_operand.vmem [shape: bf16[16,128], index: 11, kind: output, shape index: {0}]
  %s12 = inlined_call_operand.vmem [shape: f32[16,16], index: 12, kind: output, shape index: {1}]
  %13 = xla_tuple %s11, %s12
  %s14 = sld [smem:[#allocation0]]
  $region62: #{label_gcn_forward.1} parent=0
    _
  %s16 = ssub.s32 1, %s14
  %s17 = scalar_select 0, %s16, %s14
  // Predicated region
  $region2: #{label_gcn_forward.1} parent=0 // pred_check
    _
  $region3: #{label_gcn_forward.1} parent=0 // pred_check_branch
    %19 = sbr.rel (0) target = $region5
  $region4: #{label_gcn_forward.1} parent=0 // pred_region
    _
  $region5: #{label_gcn_forward.1} parent=0 // pred_fallthru
    _
  // Predicated region
  $region6: #{label_gcn_forward.1} parent=0 // pred_check
    _
  $region7: #{label_gcn_forward.1} parent=0 // pred_check_branch
    %21 = sbr.rel (0) target = $region9
  $region8: #{label_gcn_forward.1} parent=0 // pred_region
    _
  $region9: #{label_gcn_forward.1} parent=0 // pred_fallthru
    _
  // Predicated region
  $region10: #{label_gcn_forward.1} parent=0 // pred_check
    _
  $region11: #{label_gcn_forward.1} parent=0 // pred_check_branch
    %23 = sbr.rel (0) target = $region13
  $region12: #{label_gcn_forward.1} parent=0 // pred_region
    _
  $region13: #{label_gcn_forward.1} parent=0 // pred_fallthru
    _
  // Predicated region
  $region14: #{label_gcn_forward.1} parent=0 // pred_check
    _
  $region15: #{label_gcn_forward.1} parent=0 // pred_check_branch
    %25 = sbr.rel (0) target = $region17
  $region16: #{label_gcn_forward.1} parent=0 // pred_region
    _
  $region17: #{label_gcn_forward.1} parent=0 // pred_fallthru
    _
  // Predicated region
  $region18: #{label_gcn_forward.1} parent=0 // pred_check
    _
  $region19: #{label_gcn_forward.1} parent=0 // pred_check_branch
    %27 = sbr.rel (0) target = $region21
  $region20: #{label_gcn_forward.1} parent=0 // pred_region
    _
  $region21: #{label_gcn_forward.1} parent=0 // pred_fallthru
    _
  // Predicated region
  $region22: #{label_gcn_forward.1} parent=0 // pred_check
    _
  $region23: #{label_gcn_forward.1} parent=0 // pred_check_branch
    %29 = sbr.rel (0) target = $region25
  $region24: #{label_gcn_forward.1} parent=0 // pred_region
    _
  $region25: #{label_gcn_forward.1} parent=0 // pred_fallthru
    _
  // Predicated region
  $region26: #{label_gcn_forward.1} parent=0 // pred_check
    _
  $region27: #{label_gcn_forward.1} parent=0 // pred_check_branch
    %31 = sbr.rel (0) target = $region29
  $region28: #{label_gcn_forward.1} parent=0 // pred_region
    _
  $region29: #{label_gcn_forward.1} parent=0 // pred_fallthru
    _
  // Predicated region
  $region30: #{label_gcn_forward.1} parent=0 // pred_check
    _
  $region31: #{label_gcn_forward.1} parent=0 // pred_check_branch
    %33 = sbr.rel (0) target = $region33
  $region32: #{label_gcn_forward.1} parent=0 // pred_region
    _
  $region33: #{label_gcn_forward.1} parent=0 // pred_fallthru
    _
  // Predicated region
  $region34: #{label_gcn_forward.1} parent=0 // pred_check
    _
  $region35: #{label_gcn_forward.1} parent=0 // pred_check_branch
    %35 = sbr.rel (0) target = $region37
  $region36: #{label_gcn_forward.1} parent=0 // pred_region
    _
  $region37: #{label_gcn_forward.1} parent=0 // pred_fallthru
    _
  // Predicated region
  $region38: #{label_gcn_forward.1} parent=0 // pred_check
    _
  $region39: #{label_gcn_forward.1} parent=0 // pred_check_branch
    %37 = sbr.rel (0) target = $region41
  $region40: #{label_gcn_forward.1} parent=0 // pred_region
    _
  $region41: #{label_gcn_forward.1} parent=0 // pred_fallthru
    _
  // Predicated region
  $region42: #{label_gcn_forward.1} parent=0 // pred_check
    _
  $region43: #{label_gcn_forward.1} parent=0 // pred_check_branch
    %39 = sbr.rel (0) target = $region45
  $region44: #{label_gcn_forward.1} parent=0 // pred_region
    _
  $region45: #{label_gcn_forward.1} parent=0 // pred_fallthru
    _
  %v41 = vld [vmem:[%s0] sm:$0xff]
  %v42 = vld [vmem:[%s0 + $0x8] sm:$0xff]
  %v43 = vpack.c.bf16 %v42, %v41
  %v44 = vld [vmem:[%s1] sm:$0xff]
  %v45 = vld [vmem:[%s1 + $0x8] sm:$0xff]
  %v46 = vld [vmem:[%s1 + $0x10] sm:$0xff]
  %v47 = vld [vmem:[%s1 + $0x18] sm:$0xff]
  %v48 = vld [vmem:[%s2] sm:$0xf]
  %v50 = vlaneseq
  %v51 = vshrl.u32 %v50, 7
  %v52 = vsub.s32 0, %v51
  %v53 = vrot.slane %v48, %v52
  %v54 = vlaneseq
  %v55 = vshrl.u32 %v54, 7
  %v56 = vsub.s32 1, %v55
  %v57 = vrot.slane %v48, %v56
  %v58 = vlaneseq
  %v59 = vshrl.u32 %v58, 7
  %v60 = vsub.s32 2, %v59
  %v61 = vrot.slane %v48, %v60
  %v62 = vlaneseq
  %v63 = vshrl.u32 %v62, 7
  %v64 = vsub.s32 3, %v63
  %v65 = vrot.slane %v48, %v64
  %v74 = vunpack.c.l.b16 %v44
  %v75 = vunpack.c.h.b16 %v44
  %v76 = vunpack.c.l.b16 %v45
  %v77 = vunpack.c.h.b16 %v45
  %v78 = vunpack.c.l.b16 %v46
  %v79 = vunpack.c.h.b16 %v46
  %v80 = vunpack.c.l.b16 %v47
  %v81 = vunpack.c.h.b16 %v47
  %v82 = vpack.c.b16 %v78, %v74
  %v83 = vpack.c.b16 %v79, %v75
  %v84 = vpack.c.b16 %v80, %v76
  %v85 = vpack.c.b16 %v81, %v77
  %vm90 = vcmask 130048
  %v92 = vsel %vm90, %v43, 0
  %94 = vmatprep.subr.bf16.mxu0 0
  %95 = vmatpush1.bf16.msra.mxu0 0
  %96 = vmatprep.subr.bf16.mxu0 0
  %97 = vmatpush1.bf16.msra.mxu0 0
  %98 = vmatprep.subr.bf16.mxu0 0
  %99 = vmatpush1.bf16.msra.mxu0 0
  %100 = vmatprep.subr.bf16.mxu0 0
  %101 = vmatpush1.bf16.msra.mxu0 0
  %102 = vmatprep.subr.bf16.mxu0 0
  %103 = vmatpush1.bf16.msra.mxu0 0
  %104 = vmatprep.subr.bf16.mxu0 0
  %105 = vmatpush1.bf16.msra.mxu0 0
  %106 = vmatprep.subr.bf16.mxu0 0
  %107 = vmatpush1.bf16.msra.mxu0 0
  %108 = vmatprep.subr.bf16.mxu0 %v83
  %109 = vmatpush1.bf16.msra.mxu0 %v82
  %110 = vmatprep.subr.bf16.mxu0 0
  %111 = vmatpush2.bf16.msra.mxu0 0
  %112 = vmatprep.subr.bf16.mxu0 0
  %113 = vmatpush2.bf16.msra.mxu0 0
  %114 = vmatprep.subr.bf16.mxu0 0
  %115 = vmatpush2.bf16.msra.mxu0 0
  %116 = vmatprep.subr.bf16.mxu0 0
  %117 = vmatpush2.bf16.msra.mxu0 0
  %118 = vmatprep.subr.bf16.mxu0 0
  %119 = vmatpush2.bf16.msra.mxu0 0
  %120 = vmatprep.subr.bf16.mxu0 0
  %121 = vmatpush2.bf16.msra.mxu0 0
  %122 = vmatprep.subr.bf16.mxu0 0
  %123 = vmatpush2.bf16.msra.mxu0 0
  %124 = vmatprep.subr.bf16.mxu0 0
  %125 = vmatpush2.bf16.msra.mxu0 0
  %126 = vmatprep.mubr.bf16.mxu0 0
  %127 = vmatmul.mubr.bf16.gmra.mxu0 %v92
  %v128 = vpop.f32.mrf.mxu0
  %v129 = vadd.f32 %v53, %v128
  %v130 = vpop.f32.mrf.mxu0
  %v131 = vadd.f32 %v57, %v130
  %v132 = vpop.f32.mrf.mxu0
  %v133 = vadd.f32 %v53, %v132
  %v134 = vpop.f32.mrf.mxu0
  %v135 = vadd.f32 %v57, %v134
  %136 = vdwg.mxu0
  %137 = vmatprep.subr.bf16.mxu0 0
  %138 = vmatpush1.bf16.msra.mxu0 0
  %139 = vmatprep.subr.bf16.mxu0 0
  %140 = vmatpush1.bf16.msra.mxu0 0
  %141 = vmatprep.subr.bf16.mxu0 0
  %142 = vmatpush1.bf16.msra.mxu0 0
  %143 = vmatprep.subr.bf16.mxu0 0
  %144 = vmatpush1.bf16.msra.mxu0 0
  %145 = vmatprep.subr.bf16.mxu0 0
  %146 = vmatpush1.bf16.msra.mxu0 0
  %147 = vmatprep.subr.bf16.mxu0 0
  %148 = vmatpush1.bf16.msra.mxu0 0
  %149 = vmatprep.subr.bf16.mxu0 0
  %150 = vmatpush1.bf16.msra.mxu0 0
  %151 = vmatprep.subr.bf16.mxu0 %v85
  %152 = vmatpush1.bf16.msra.mxu0 %v84
  %153 = vmatprep.subr.bf16.mxu0 0
  %154 = vmatpush2.bf16.msra.mxu0 0
  %155 = vmatprep.subr.bf16.mxu0 0
  %156 = vmatpush2.bf16.msra.mxu0 0
  %157 = vmatprep.subr.bf16.mxu0 0
  %158 = vmatpush2.bf16.msra.mxu0 0
  %159 = vmatprep.subr.bf16.mxu0 0
  %160 = vmatpush2.bf16.msra.mxu0 0
  %161 = vmatprep.subr.bf16.mxu0 0
  %162 = vmatpush2.bf16.msra.mxu0 0
  %163 = vmatprep.subr.bf16.mxu0 0
  %164 = vmatpush2.bf16.msra.mxu0 0
  %165 = vmatprep.subr.bf16.mxu0 0
  %166 = vmatpush2.bf16.msra.mxu0 0
  %167 = vmatprep.subr.bf16.mxu0 0
  %168 = vmatpush2.bf16.msra.mxu0 0
  %169 = vmatprep.mubr.bf16.mxu0 0
  %170 = vmatmul.mubr.bf16.gmra.mxu0 %v92
  %v171 = vpop.f32.mrf.mxu0
  %v172 = vadd.f32 %v61, %v171
  %v173 = vpop.f32.mrf.mxu0
  %v174 = vadd.f32 %v65, %v173
  %v175 = vpop.f32.mrf.mxu0
  %v176 = vadd.f32 %v61, %v175
  %v177 = vpop.f32.mrf.mxu0
  %v178 = vadd.f32 %v65, %v177
  %179 = vdwg.mxu0
  %v180 = vmax.f32 %v129, 0.0
  %v181 = vmax.f32 %v131, 0.0
  %v182 = vmax.f32 %v172, 0.0
  %v183 = vmax.f32 %v174, 0.0
  %v184 = vmax.f32 %v133, 0.0
  %v185 = vmax.f32 %v135, 0.0
  %v186 = vmax.f32 %v176, 0.0
  %v187 = vmax.f32 %v178, 0.0
  %v188 = vpack.c.bf16 %v184, %v180
  %v189 = vpack.c.bf16 %v185, %v181
  %v190 = vpack.c.bf16 %v186, %v182
  %v191 = vpack.c.bf16 %v187, %v183
  %v192 = vld [vmem:[%s3] sm:$0xff]
  %v193 = vld [vmem:[%s3 + $0x8] sm:$0xff]
  %v194 = vld [vmem:[%s3 + $0x10] sm:$0xff]
  %v195 = vld [vmem:[%s3 + $0x18] sm:$0xff]
  %v196 = vld [vmem:[%s3 + $0x20] sm:$0xff]
  %v197 = vld [vmem:[%s3 + $0x28] sm:$0xff]
  %v198 = vld [vmem:[%s3 + $0x30] sm:$0xff]
  %v199 = vld [vmem:[%s3 + $0x38] sm:$0xff]
  %v200 = vld [vmem:[%s3 + $0x40] sm:$0xff]
  %v201 = vld [vmem:[%s3 + $0x48] sm:$0xff]
  %v202 = vld [vmem:[%s3 + $0x50] sm:$0xff]
  %v203 = vld [vmem:[%s3 + $0x58] sm:$0xff]
  %v204 = vld [vmem:[%s3 + $0x60] sm:$0xff]
  %v205 = vld [vmem:[%s3 + $0x68] sm:$0xff]
  %v206 = vld [vmem:[%s3 + $0x70] sm:$0xff]
  %v207 = vld [vmem:[%s3 + $0x78] sm:$0xff]
  %v208 = vld [vmem:[%s3 + $0x80] sm:$0xff]
  %v209 = vld [vmem:[%s3 + $0x88] sm:$0xff]
  %v210 = vld [vmem:[%s3 + $0x90] sm:$0xff]
  %v211 = vld [vmem:[%s3 + $0x98] sm:$0xff]
  %v212 = vld [vmem:[%s3 + $0xa0] sm:$0xff]
  %v213 = vld [vmem:[%s3 + $0xa8] sm:$0xff]
  %v214 = vld [vmem:[%s3 + $0xb0] sm:$0xff]
  %v215 = vld [vmem:[%s3 + $0xb8] sm:$0xff]
  %v216 = vld [vmem:[%s3 + $0xc0] sm:$0xff]
  %v217 = vld [vmem:[%s3 + $0xc8] sm:$0xff]
  %v218 = vld [vmem:[%s3 + $0xd0] sm:$0xff]
  %v219 = vld [vmem:[%s3 + $0xd8] sm:$0xff]
  %v220 = vld [vmem:[%s3 + $0xe0] sm:$0xff]
  %v221 = vld [vmem:[%s3 + $0xe8] sm:$0xff]
  %v222 = vld [vmem:[%s3 + $0xf0] sm:$0xff]
  %v223 = vld [vmem:[%s3 + $0xf8] sm:$0xff]
  %v224 = vld [vmem:[%s3 + $0x100] sm:$0xff]
  %v225 = vld [vmem:[%s3 + $0x108] sm:$0xff]
  %v226 = vld [vmem:[%s3 + $0x110] sm:$0xff]
  %v227 = vld [vmem:[%s3 + $0x118] sm:$0xff]
  %v228 = vld [vmem:[%s3 + $0x120] sm:$0xff]
  %v229 = vld [vmem:[%s3 + $0x128] sm:$0xff]
  %v230 = vld [vmem:[%s3 + $0x130] sm:$0xff]
  %v231 = vld [vmem:[%s3 + $0x138] sm:$0xff]
  %v232 = vld [vmem:[%s3 + $0x140] sm:$0xff]
  %v233 = vld [vmem:[%s3 + $0x148] sm:$0xff]
  %v234 = vld [vmem:[%s3 + $0x150] sm:$0xff]
  %v235 = vld [vmem:[%s3 + $0x158] sm:$0xff]
  %v236 = vld [vmem:[%s3 + $0x160] sm:$0xff]
  %v237 = vld [vmem:[%s3 + $0x168] sm:$0xff]
  %v238 = vld [vmem:[%s3 + $0x170] sm:$0xff]
  %v239 = vld [vmem:[%s3 + $0x178] sm:$0xff]
  %v240 = vld [vmem:[%s3 + $0x180] sm:$0xff]
  %v241 = vld [vmem:[%s3 + $0x188] sm:$0xff]
  %v242 = vld [vmem:[%s3 + $0x190] sm:$0xff]
  %v243 = vld [vmem:[%s3 + $0x198] sm:$0xff]
  %v244 = vld [vmem:[%s3 + $0x1a0] sm:$0xff]
  %v245 = vld [vmem:[%s3 + $0x1a8] sm:$0xff]
  %v246 = vld [vmem:[%s3 + $0x1b0] sm:$0xff]
  %v247 = vld [vmem:[%s3 + $0x1b8] sm:$0xff]
  %v248 = vld [vmem:[%s3 + $0x1c0] sm:$0xff]
  %v249 = vld [vmem:[%s3 + $0x1c8] sm:$0xff]
  %v250 = vld [vmem:[%s3 + $0x1d0] sm:$0xff]
  %v251 = vld [vmem:[%s3 + $0x1d8] sm:$0xff]
  %v252 = vld [vmem:[%s3 + $0x1e0] sm:$0xff]
  %v253 = vld [vmem:[%s3 + $0x1e8] sm:$0xff]
  %v254 = vld [vmem:[%s3 + $0x1f0] sm:$0xff]
  %v255 = vld [vmem:[%s3 + $0x1f8] sm:$0xff]
  %v256 = vld [vmem:[%s4] sm:$0x3]
  %v258 = vlaneseq
  %v259 = vshrl.u32 %v258, 7
  %v260 = vsub.s32 0, %v259
  %v261 = vrot.slane %v256, %v260
  %v262 = vlaneseq
  %v263 = vshrl.u32 %v262, 7
  %v264 = vsub.s32 1, %v263
  %v265 = vrot.slane %v256, %v264
  %v332 = vunpack.c.l.b16 %v192
  %v333 = vunpack.c.h.b16 %v192
  %v334 = vunpack.c.l.b16 %v193
  %v335 = vunpack.c.h.b16 %v193
  %v336 = vunpack.c.l.b16 %v194
  %v337 = vunpack.c.h.b16 %v194
  %v338 = vunpack.c.l.b16 %v195
  %v339 = vunpack.c.h.b16 %v195
  %v340 = vunpack.c.l.b16 %v196
  %v341 = vunpack.c.h.b16 %v196
  %v342 = vunpack.c.l.b16 %v197
  %v343 = vunpack.c.h.b16 %v197
  %v344 = vunpack.c.l.b16 %v198
  %v345 = vunpack.c.h.b16 %v198
  %v346 = vunpack.c.l.b16 %v199
  %v347 = vunpack.c.h.b16 %v199
  %v348 = vunpack.c.l.b16 %v200
  %v349 = vunpack.c.h.b16 %v200
  %v350 = vunpack.c.l.b16 %v201
  %v351 = vunpack.c.h.b16 %v201
  %v352 = vunpack.c.l.b16 %v202
  %v353 = vunpack.c.h.b16 %v202
  %v354 = vunpack.c.l.b16 %v203
  %v355 = vunpack.c.h.b16 %v203
  %v356 = vunpack.c.l.b16 %v204
  %v357 = vunpack.c.h.b16 %v204
  %v358 = vunpack.c.l.b16 %v205
  %v359 = vunpack.c.h.b16 %v205
  %v360 = vunpack.c.l.b16 %v206
  %v361 = vunpack.c.h.b16 %v206
  %v362 = vunpack.c.l.b16 %v207
  %v363 = vunpack.c.h.b16 %v207
  %v364 = vunpack.c.l.b16 %v208
  %v365 = vunpack.c.h.b16 %v208
  %v366 = vunpack.c.l.b16 %v209
  %v367 = vunpack.c.h.b16 %v209
  %v368 = vunpack.c.l.b16 %v210
  %v369 = vunpack.c.h.b16 %v210
  %v370 = vunpack.c.l.b16 %v211
  %v371 = vunpack.c.h.b16 %v211
  %v372 = vunpack.c.l.b16 %v212
  %v373 = vunpack.c.h.b16 %v212
  %v374 = vunpack.c.l.b16 %v213
  %v375 = vunpack.c.h.b16 %v213
  %v376 = vunpack.c.l.b16 %v214
  %v377 = vunpack.c.h.b16 %v214
  %v378 = vunpack.c.l.b16 %v215
  %v379 = vunpack.c.h.b16 %v215
  %v380 = vunpack.c.l.b16 %v216
  %v381 = vunpack.c.h.b16 %v216
  %v382 = vunpack.c.l.b16 %v217
  %v383 = vunpack.c.h.b16 %v217
  %v384 = vunpack.c.l.b16 %v218
  %v385 = vunpack.c.h.b16 %v218
  %v386 = vunpack.c.l.b16 %v219
  %v387 = vunpack.c.h.b16 %v219
  %v388 = vunpack.c.l.b16 %v220
  %v389 = vunpack.c.h.b16 %v220
  %v390 = vunpack.c.l.b16 %v221
  %v391 = vunpack.c.h.b16 %v221
  %v392 = vunpack.c.l.b16 %v222
  %v393 = vunpack.c.h.b16 %v222
  %v394 = vunpack.c.l.b16 %v223
  %v395 = vunpack.c.h.b16 %v223
  %v396 = vunpack.c.l.b16 %v224
  %v397 = vunpack.c.h.b16 %v224
  %v398 = vunpack.c.l.b16 %v225
  %v399 = vunpack.c.h.b16 %v225
  %v400 = vunpack.c.l.b16 %v226
  %v401 = vunpack.c.h.b16 %v226
  %v402 = vunpack.c.l.b16 %v227
  %v403 = vunpack.c.h.b16 %v227
  %v404 = vunpack.c.l.b16 %v228
  %v405 = vunpack.c.h.b16 %v228
  %v406 = vunpack.c.l.b16 %v229
  %v407 = vunpack.c.h.b16 %v229
  %v408 = vunpack.c.l.b16 %v230
  %v409 = vunpack.c.h.b16 %v230
  %v410 = vunpack.c.l.b16 %v231
  %v411 = vunpack.c.h.b16 %v231
  %v412 = vunpack.c.l.b16 %v232
  %v413 = vunpack.c.h.b16 %v232
  %v414 = vunpack.c.l.b16 %v233
  %v415 = vunpack.c.h.b16 %v233
  %v416 = vunpack.c.l.b16 %v234
  %v417 = vunpack.c.h.b16 %v234
  %v418 = vunpack.c.l.b16 %v235
  %v419 = vunpack.c.h.b16 %v235
  %v420 = vunpack.c.l.b16 %v236
  %v421 = vunpack.c.h.b16 %v236
  %v422 = vunpack.c.l.b16 %v237
  %v423 = vunpack.c.h.b16 %v237
  %v424 = vunpack.c.l.b16 %v238
  %v425 = vunpack.c.h.b16 %v238
  %v426 = vunpack.c.l.b16 %v239
  %v427 = vunpack.c.h.b16 %v239
  %v428 = vunpack.c.l.b16 %v240
  %v429 = vunpack.c.h.b16 %v240
  %v430 = vunpack.c.l.b16 %v241
  %v431 = vunpack.c.h.b16 %v241
  %v432 = vunpack.c.l.b16 %v242
  %v433 = vunpack.c.h.b16 %v242
  %v434 = vunpack.c.l.b16 %v243
  %v435 = vunpack.c.h.b16 %v243
  %v436 = vunpack.c.l.b16 %v244
  %v437 = vunpack.c.h.b16 %v244
  %v438 = vunpack.c.l.b16 %v245
  %v439 = vunpack.c.h.b16 %v245
  %v440 = vunpack.c.l.b16 %v246
  %v441 = vunpack.c.h.b16 %v246
  %v442 = vunpack.c.l.b16 %v247
  %v443 = vunpack.c.h.b16 %v247
  %v444 = vunpack.c.l.b16 %v248
  %v445 = vunpack.c.h.b16 %v248
  %v446 = vunpack.c.l.b16 %v249
  %v447 = vunpack.c.h.b16 %v249
  %v448 = vunpack.c.l.b16 %v250
  %v449 = vunpack.c.h.b16 %v250
  %v450 = vunpack.c.l.b16 %v251
  %v451 = vunpack.c.h.b16 %v251
  %v452 = vunpack.c.l.b16 %v252
  %v453 = vunpack.c.h.b16 %v252
  %v454 = vunpack.c.l.b16 %v253
  %v455 = vunpack.c.h.b16 %v253
  %v456 = vunpack.c.l.b16 %v254
  %v457 = vunpack.c.h.b16 %v254
  %v458 = vunpack.c.l.b16 %v255
  %v459 = vunpack.c.h.b16 %v255
  %v460 = vpack.c.b16 %v334, %v332
  %v461 = vpack.c.b16 %v335, %v333
  %v462 = vpack.c.b16 %v338, %v336
  %v463 = vpack.c.b16 %v339, %v337
  %v464 = vpack.c.b16 %v342, %v340
  %v465 = vpack.c.b16 %v343, %v341
  %v466 = vpack.c.b16 %v346, %v344
  %v467 = vpack.c.b16 %v347, %v345
  %v468 = vpack.c.b16 %v350, %v348
  %v469 = vpack.c.b16 %v351, %v349
  %v470 = vpack.c.b16 %v354, %v352
  %v471 = vpack.c.b16 %v355, %v353
  %v472 = vpack.c.b16 %v358, %v356
  %v473 = vpack.c.b16 %v359, %v357
  %v474 = vpack.c.b16 %v362, %v360
  %v475 = vpack.c.b16 %v363, %v361
  %v476 = vpack.c.b16 %v366, %v364
  %v477 = vpack.c.b16 %v367, %v365
  %v478 = vpack.c.b16 %v370, %v368
  %v479 = vpack.c.b16 %v371, %v369
  %v480 = vpack.c.b16 %v374, %v372
  %v481 = vpack.c.b16 %v375, %v373
  %v482 = vpack.c.b16 %v378, %v376
  %v483 = vpack.c.b16 %v379, %v377
  %v484 = vpack.c.b16 %v382, %v380
  %v485 = vpack.c.b16 %v383, %v381
  %v486 = vpack.c.b16 %v386, %v384
  %v487 = vpack.c.b16 %v387, %v385
  %v488 = vpack.c.b16 %v390, %v388
  %v489 = vpack.c.b16 %v391, %v389
  %v490 = vpack.c.b16 %v394, %v392
  %v491 = vpack.c.b16 %v395, %v393
  %v492 = vpack.c.b16 %v398, %v396
  %v493 = vpack.c.b16 %v399, %v397
  %v494 = vpack.c.b16 %v402, %v400
  %v495 = vpack.c.b16 %v403, %v401
  %v496 = vpack.c.b16 %v406, %v404
  %v497 = vpack.c.b16 %v407, %v405
  %v498 = vpack.c.b16 %v410, %v408
  %v499 = vpack.c.b16 %v411, %v409
  %v500 = vpack.c.b16 %v414, %v412
  %v501 = vpack.c.b16 %v415, %v413
  %v502 = vpack.c.b16 %v418, %v416
  %v503 = vpack.c.b16 %v419, %v417
  %v504 = vpack.c.b16 %v422, %v420
  %v505 = vpack.c.b16 %v423, %v421
  %v506 = vpack.c.b16 %v426, %v424
  %v507 = vpack.c.b16 %v427, %v425
  %v508 = vpack.c.b16 %v430, %v428
  %v509 = vpack.c.b16 %v431, %v429
  %v510 = vpack.c.b16 %v434, %v432
  %v511 = vpack.c.b16 %v435, %v433
  %v512 = vpack.c.b16 %v438, %v436
  %v513 = vpack.c.b16 %v439, %v437
  %v514 = vpack.c.b16 %v442, %v440
  %v515 = vpack.c.b16 %v443, %v441
  %v516 = vpack.c.b16 %v446, %v444
  %v517 = vpack.c.b16 %v447, %v445
  %v518 = vpack.c.b16 %v450, %v448
  %v519 = vpack.c.b16 %v451, %v449
  %v520 = vpack.c.b16 %v454, %v452
  %v521 = vpack.c.b16 %v455, %v453
  %v522 = vpack.c.b16 %v458, %v456
  %v523 = vpack.c.b16 %v459, %v457
  %588 = vmatprep.subr.bf16.mxu0 %v475
  %589 = vmatpush1.bf16.msra.mxu0 %v474
  %590 = vmatprep.subr.bf16.mxu0 %v473
  %591 = vmatpush1.bf16.msra.mxu0 %v472
  %592 = vmatprep.subr.bf16.mxu0 %v471
  %593 = vmatpush1.bf16.msra.mxu0 %v470
  %594 = vmatprep.subr.bf16.mxu0 %v469
  %595 = vmatpush1.bf16.msra.mxu0 %v468
  %596 = vmatprep.subr.bf16.mxu0 %v467
  %597 = vmatpush1.bf16.msra.mxu0 %v466
  %598 = vmatprep.subr.bf16.mxu0 %v465
  %599 = vmatpush1.bf16.msra.mxu0 %v464
  %600 = vmatprep.subr.bf16.mxu0 %v463
  %601 = vmatpush1.bf16.msra.mxu0 %v462
  %602 = vmatprep.subr.bf16.mxu0 %v461
  %603 = vmatpush1.bf16.msra.mxu0 %v460
  %604 = vmatprep.subr.bf16.mxu0 %v491
  %605 = vmatpush2.bf16.msra.mxu0 %v490
  %606 = vmatprep.subr.bf16.mxu0 %v489
  %607 = vmatpush2.bf16.msra.mxu0 %v488
  %608 = vmatprep.subr.bf16.mxu0 %v487
  %609 = vmatpush2.bf16.msra.mxu0 %v486
  %610 = vmatprep.subr.bf16.mxu0 %v485
  %611 = vmatpush2.bf16.msra.mxu0 %v484
  %612 = vmatprep.subr.bf16.mxu0 %v483
  %613 = vmatpush2.bf16.msra.mxu0 %v482
  %614 = vmatprep.subr.bf16.mxu0 %v481
  %615 = vmatpush2.bf16.msra.mxu0 %v480
  %616 = vmatprep.subr.bf16.mxu0 %v479
  %617 = vmatpush2.bf16.msra.mxu0 %v478
  %618 = vmatprep.subr.bf16.mxu0 %v477
  %619 = vmatpush2.bf16.msra.mxu0 %v476
  %620 = vmatprep.mubr.bf16.mxu0 %v189
  %621 = vmatmul.mubr.bf16.gmra.mxu0 %v188
  %v622 = vpop.f32.mrf.mxu0
  %v623 = vadd.f32 %v261, %v622
  %v624 = vpop.f32.mrf.mxu0
  %v625 = vadd.f32 %v265, %v624
  %v626 = vpop.f32.mrf.mxu0
  %v627 = vadd.f32 %v261, %v626
  %v628 = vpop.f32.mrf.mxu0
  %v629 = vadd.f32 %v265, %v628
  %630 = vdwg.mxu0
  %631 = vmatprep.subr.bf16.mxu0 %v507
  %632 = vmatpush1.bf16.msra.mxu0 %v506
  %633 = vmatprep.subr.bf16.mxu0 %v505
  %634 = vmatpush1.bf16.msra.mxu0 %v504
  %635 = vmatprep.subr.bf16.mxu0 %v503
  %636 = vmatpush1.bf16.msra.mxu0 %v502
  %637 = vmatprep.subr.bf16.mxu0 %v501
  %638 = vmatpush1.bf16.msra.mxu0 %v500
  %639 = vmatprep.subr.bf16.mxu0 %v499
  %640 = vmatpush1.bf16.msra.mxu0 %v498
  %641 = vmatprep.subr.bf16.mxu0 %v497
  %642 = vmatpush1.bf16.msra.mxu0 %v496
  %643 = vmatprep.subr.bf16.mxu0 %v495
  %644 = vmatpush1.bf16.msra.mxu0 %v494
  %645 = vmatprep.subr.bf16.mxu0 %v493
  %646 = vmatpush1.bf16.msra.mxu0 %v492
  %647 = vmatprep.subr.bf16.mxu0 %v523
  %648 = vmatpush2.bf16.msra.mxu0 %v522
  %649 = vmatprep.subr.bf16.mxu0 %v521
  %650 = vmatpush2.bf16.msra.mxu0 %v520
  %651 = vmatprep.subr.bf16.mxu0 %v519
  %652 = vmatpush2.bf16.msra.mxu0 %v518
  %653 = vmatprep.subr.bf16.mxu0 %v517
  %654 = vmatpush2.bf16.msra.mxu0 %v516
  %655 = vmatprep.subr.bf16.mxu0 %v515
  %656 = vmatpush2.bf16.msra.mxu0 %v514
  %657 = vmatprep.subr.bf16.mxu0 %v513
  %658 = vmatpush2.bf16.msra.mxu0 %v512
  %659 = vmatprep.subr.bf16.mxu0 %v511
  %660 = vmatpush2.bf16.msra.mxu0 %v510
  %661 = vmatprep.subr.bf16.mxu0 %v509
  %662 = vmatpush2.bf16.msra.mxu0 %v508
  %663 = vmatprep.mubr.bf16.mxu0 %v191
  %664 = vmatmul.mubr.bf16.gmra.mxu0 %v190
  %v665 = vpop.f32.mrf.mxu0
  %v666 = vadd.f32 %v623, %v665
  %v667 = vpop.f32.mrf.mxu0
  %v668 = vadd.f32 %v625, %v667
  %v669 = vpop.f32.mrf.mxu0
  %v670 = vadd.f32 %v627, %v669
  %v671 = vpop.f32.mrf.mxu0
  %v672 = vadd.f32 %v629, %v671
  %673 = vdwg.mxu0
  %v674 = vmax.f32 %v666, 0.0
  %v675 = vmax.f32 %v668, 0.0
  %v676 = vmax.f32 %v670, 0.0
  %v677 = vmax.f32 %v672, 0.0
  %v678 = vpack.c.bf16 %v676, %v674
  %v679 = vpack.c.bf16 %v677, %v675
  %v680 = vld [vmem:[%s5] sm:$0xf]
  %v681 = vld [vmem:[%s5 + $0x4] sm:$0xf]
  %v682 = vld [vmem:[%s5 + $0x8] sm:$0xf]
  %v683 = vld [vmem:[%s5 + $0xc] sm:$0xf]
  %v684 = vld [vmem:[%s5 + $0x10] sm:$0xf]
  %v685 = vld [vmem:[%s5 + $0x14] sm:$0xf]
  %v686 = vld [vmem:[%s5 + $0x18] sm:$0xf]
  %v687 = vld [vmem:[%s5 + $0x1c] sm:$0xf]
  %v688 = vld [vmem:[%s5 + $0x20] sm:$0xf]
  %v689 = vld [vmem:[%s5 + $0x24] sm:$0xf]
  %v690 = vld [vmem:[%s5 + $0x28] sm:$0xf]
  %v691 = vld [vmem:[%s5 + $0x2c] sm:$0xf]
  %v692 = vld [vmem:[%s5 + $0x30] sm:$0xf]
  %v693 = vld [vmem:[%s5 + $0x34] sm:$0xf]
  %v694 = vld [vmem:[%s5 + $0x38] sm:$0xf]
  %v695 = vld [vmem:[%s5 + $0x3c] sm:$0xf]
  %v696 = vld [vmem:[%s5 + $0x40] sm:$0xf]
  %v697 = vld [vmem:[%s5 + $0x44] sm:$0xf]
  %v698 = vld [vmem:[%s5 + $0x48] sm:$0xf]
  %v699 = vld [vmem:[%s5 + $0x4c] sm:$0xf]
  %v700 = vld [vmem:[%s5 + $0x50] sm:$0xf]
  %v701 = vld [vmem:[%s5 + $0x54] sm:$0xf]
  %v702 = vld [vmem:[%s5 + $0x58] sm:$0xf]
  %v703 = vld [vmem:[%s5 + $0x5c] sm:$0xf]
  %v704 = vld [vmem:[%s5 + $0x60] sm:$0xf]
  %v705 = vld [vmem:[%s5 + $0x64] sm:$0xf]
  %v706 = vld [vmem:[%s5 + $0x68] sm:$0xf]
  %v707 = vld [vmem:[%s5 + $0x6c] sm:$0xf]
  %v708 = vld [vmem:[%s5 + $0x70] sm:$0xf]
  %v709 = vld [vmem:[%s5 + $0x74] sm:$0xf]
  %v710 = vld [vmem:[%s5 + $0x78] sm:$0xf]
  %v711 = vld [vmem:[%s5 + $0x7c] sm:$0xf]
  %v712 = vld [vmem:[%s6] sm:$0x1]
  %v714 = vlaneseq
  %v715 = vshrl.u32 %v714, 7
  %v716 = vsub.s32 0, %v715
  %v717 = vrot.slane %v712, %v716
  %v751 = vunpack.c.l.b16 %v680
  %v752 = vunpack.c.l.b16 %v681
  %v753 = vunpack.c.l.b16 %v682
  %v754 = vunpack.c.l.b16 %v683
  %v755 = vunpack.c.l.b16 %v684
  %v756 = vunpack.c.l.b16 %v685
  %v757 = vunpack.c.l.b16 %v686
  %v758 = vunpack.c.l.b16 %v687
  %v759 = vunpack.c.l.b16 %v688
  %v760 = vunpack.c.l.b16 %v689
  %v761 = vunpack.c.l.b16 %v690
  %v762 = vunpack.c.l.b16 %v691
  %v763 = vunpack.c.l.b16 %v692
  %v764 = vunpack.c.l.b16 %v693
  %v765 = vunpack.c.l.b16 %v694
  %v766 = vunpack.c.l.b16 %v695
  %v767 = vunpack.c.l.b16 %v696
  %v768 = vunpack.c.l.b16 %v697
  %v769 = vunpack.c.l.b16 %v698
  %v770 = vunpack.c.l.b16 %v699
  %v771 = vunpack.c.l.b16 %v700
  %v772 = vunpack.c.l.b16 %v701
  %v773 = vunpack.c.l.b16 %v702
  %v774 = vunpack.c.l.b16 %v703
  %v775 = vunpack.c.l.b16 %v704
  %v776 = vunpack.c.l.b16 %v705
  %v777 = vunpack.c.l.b16 %v706
  %v778 = vunpack.c.l.b16 %v707
  %v779 = vunpack.c.l.b16 %v708
  %v780 = vunpack.c.l.b16 %v709
  %v781 = vunpack.c.l.b16 %v710
  %v782 = vunpack.c.l.b16 %v711
  %v783 = vpack.c.b16 %v752, %v751
  %v784 = vpack.c.b16 %v754, %v753
  %v785 = vpack.c.b16 %v756, %v755
  %v786 = vpack.c.b16 %v758, %v757
  %v787 = vpack.c.b16 %v760, %v759
  %v788 = vpack.c.b16 %v762, %v761
  %v789 = vpack.c.b16 %v764, %v763
  %v790 = vpack.c.b16 %v766, %v765
  %v791 = vpack.c.b16 %v768, %v767
  %v792 = vpack.c.b16 %v770, %v769
  %v793 = vpack.c.b16 %v772, %v771
  %v794 = vpack.c.b16 %v774, %v773
  %v795 = vpack.c.b16 %v776, %v775
  %v796 = vpack.c.b16 %v778, %v777
  %v797 = vpack.c.b16 %v780, %v779
  %v798 = vpack.c.b16 %v782, %v781
  %815 = vmatprep.subr.bf16.mxu0 0
  %816 = vmatpush1.bf16.msra.mxu0 %v790
  %817 = vmatprep.subr.bf16.mxu0 0
  %818 = vmatpush1.bf16.msra.mxu0 %v789
  %819 = vmatprep.subr.bf16.mxu0 0
  %820 = vmatpush1.bf16.msra.mxu0 %v788
  %821 = vmatprep.subr.bf16.mxu0 0
  %822 = vmatpush1.bf16.msra.mxu0 %v787
  %823 = vmatprep.subr.bf16.mxu0 0
  %824 = vmatpush1.bf16.msra.mxu0 %v786
  %825 = vmatprep.subr.bf16.mxu0 0
  %826 = vmatpush1.bf16.msra.mxu0 %v785
  %827 = vmatprep.subr.bf16.mxu0 0
  %828 = vmatpush1.bf16.msra.mxu0 %v784
  %829 = vmatprep.subr.bf16.mxu0 0
  %830 = vmatpush1.bf16.msra.mxu0 %v783
  %831 = vmatprep.subr.bf16.mxu0 0
  %832 = vmatpush2.bf16.msra.mxu0 %v798
  %833 = vmatprep.subr.bf16.mxu0 0
  %834 = vmatpush2.bf16.msra.mxu0 %v797
  %835 = vmatprep.subr.bf16.mxu0 0
  %836 = vmatpush2.bf16.msra.mxu0 %v796
  %837 = vmatprep.subr.bf16.mxu0 0
  %838 = vmatpush2.bf16.msra.mxu0 %v795
  %839 = vmatprep.subr.bf16.mxu0 0
  %840 = vmatpush2.bf16.msra.mxu0 %v794
  %841 = vmatprep.subr.bf16.mxu0 0
  %842 = vmatpush2.bf16.msra.mxu0 %v793
  %843 = vmatprep.subr.bf16.mxu0 0
  %844 = vmatpush2.bf16.msra.mxu0 %v792
  %845 = vmatprep.subr.bf16.mxu0 0
  %846 = vmatpush2.bf16.msra.mxu0 %v791
  %847 = vmatprep.mubr.bf16.mxu0 %v679
  %848 = vmatmul.mubr.bf16.gmra.mxu0 %v678
  %v849 = vpop.f32.mrf.mxu0
  %v850 = vadd.f32 %v717, %v849
  %v851 = vpop.f32.mrf.mxu0
  %v852 = vpop.f32.mrf.mxu0
  %v853 = vadd.f32 %v717, %v852
  %v854 = vpop.f32.mrf.mxu0
  %855 = vdwg.mxu0
  %v856 = vpack.c.bf16 %v853, %v850
  %v858 = vunpack.c.l.b16 %v856
  %v859 = vunpack.c.h.b16 %v856
  %v860 = vpack.c.b16 %v858, %v858
  %v861 = vpack.c.b16 %v859, %v859
  %864 = vst [vmem:[%s11] sm:$0xf] %v860
  %865 = vst [vmem:[%s11 + $0x4] sm:$0xf] %v861
  %v866 = vld [vmem:[%s7] sm:$0xf]
  %v867 = vld [vmem:[%s7 + $0x4] sm:$0xf]
  %v868 = vld [vmem:[%s7 + $0x8] sm:$0xf]
  %v869 = vld [vmem:[%s7 + $0xc] sm:$0xf]
  %v870 = vld [vmem:[%s7 + $0x10] sm:$0xf]
  %v871 = vld [vmem:[%s7 + $0x14] sm:$0xf]
  %v872 = vld [vmem:[%s7 + $0x18] sm:$0xf]
  %v873 = vld [vmem:[%s7 + $0x1c] sm:$0xf]
  %v874 = vld [vmem:[%s7 + $0x20] sm:$0xf]
  %v875 = vld [vmem:[%s7 + $0x24] sm:$0xf]
  %v876 = vld [vmem:[%s7 + $0x28] sm:$0xf]
  %v877 = vld [vmem:[%s7 + $0x2c] sm:$0xf]
  %v878 = vld [vmem:[%s7 + $0x30] sm:$0xf]
  %v879 = vld [vmem:[%s7 + $0x34] sm:$0xf]
  %v880 = vld [vmem:[%s7 + $0x38] sm:$0xf]
  %v881 = vld [vmem:[%s7 + $0x3c] sm:$0xf]
  %v882 = vld [vmem:[%s8] sm:$0x1]
  %v884 = vlaneseq
  %v885 = vshrl.u32 %v884, 7
  %v886 = vsub.s32 0, %v885
  %v887 = vrot.slane %v882, %v886
  %v905 = vunpack.c.l.b16 %v866
  %v906 = vunpack.c.l.b16 %v867
  %v907 = vunpack.c.l.b16 %v868
  %v908 = vunpack.c.l.b16 %v869
  %v909 = vunpack.c.l.b16 %v870
  %v910 = vunpack.c.l.b16 %v871
  %v911 = vunpack.c.l.b16 %v872
  %v912 = vunpack.c.l.b16 %v873
  %v913 = vunpack.c.l.b16 %v874
  %v914 = vunpack.c.l.b16 %v875
  %v915 = vunpack.c.l.b16 %v876
  %v916 = vunpack.c.l.b16 %v877
  %v917 = vunpack.c.l.b16 %v878
  %v918 = vunpack.c.l.b16 %v879
  %v919 = vunpack.c.l.b16 %v880
  %v920 = vunpack.c.l.b16 %v881
  %v921 = vpack.c.b16 %v906, %v905
  %v922 = vpack.c.b16 %v908, %v907
  %v923 = vpack.c.b16 %v910, %v909
  %v924 = vpack.c.b16 %v912, %v911
  %v925 = vpack.c.b16 %v914, %v913
  %v926 = vpack.c.b16 %v916, %v915
  %v927 = vpack.c.b16 %v918, %v917
  %v928 = vpack.c.b16 %v920, %v919
  %937 = vmatprep.subr.bf16.mxu0 0
  %938 = vmatpush1.bf16.msra.mxu0 %v928
  %939 = vmatprep.subr.bf16.mxu0 0
  %940 = vmatpush1.bf16.msra.mxu0 %v927
  %941 = vmatprep.subr.bf16.mxu0 0
  %942 = vmatpush1.bf16.msra.mxu0 %v926
  %943 = vmatprep.subr.bf16.mxu0 0
  %944 = vmatpush1.bf16.msra.mxu0 %v925
  %945 = vmatprep.subr.bf16.mxu0 0
  %946 = vmatpush1.bf16.msra.mxu0 %v924
  %947 = vmatprep.subr.bf16.mxu0 0
  %948 = vmatpush1.bf16.msra.mxu0 %v923
  %949 = vmatprep.subr.bf16.mxu0 0
  %950 = vmatpush1.bf16.msra.mxu0 %v922
  %951 = vmatprep.subr.bf16.mxu0 0
  %952 = vmatpush1.bf16.msra.mxu0 %v921
  %953 = vmatprep.subr.bf16.mxu0 0
  %954 = vmatpush2.bf16.msra.mxu0 0
  %955 = vmatprep.subr.bf16.mxu0 0
  %956 = vmatpush2.bf16.msra.mxu0 0
  %957 = vmatprep.subr.bf16.mxu0 0
  %958 = vmatpush2.bf16.msra.mxu0 0
  %959 = vmatprep.subr.bf16.mxu0 0
  %960 = vmatpush2.bf16.msra.mxu0 0
  %961 = vmatprep.subr.bf16.mxu0 0
  %962 = vmatpush2.bf16.msra.mxu0 0
  %963 = vmatprep.subr.bf16.mxu0 0
  %964 = vmatpush2.bf16.msra.mxu0 0
  %965 = vmatprep.subr.bf16.mxu0 0
  %966 = vmatpush2.bf16.msra.mxu0 0
  %967 = vmatprep.subr.bf16.mxu0 0
  %968 = vmatpush2.bf16.msra.mxu0 0
  %969 = vmatprep.mubr.bf16.mxu0 0
  %970 = vmatmul.mubr.bf16.gmra.mxu0 %v856
  %v971 = vpop.f32.mrf.mxu0
  %v972 = vadd.f32 %v887, %v971
  %v973 = vpop.f32.mrf.mxu0
  %v974 = vpop.f32.mrf.mxu0
  %v975 = vadd.f32 %v887, %v974
  %v976 = vpop.f32.mrf.mxu0
  %977 = vdwg.mxu0
  %v978 = vmax.f32 %v972, 0.0
  %v979 = vmax.f32 %v975, 0.0
  %v980 = vpack.c.bf16 %v979, %v978
  %v981 = vld [vmem:[%s9] sm:$0xf]
  %v982 = vld [vmem:[%s9 + $0x4] sm:$0xf]
  %v983 = vld [vmem:[%s9 + $0x8] sm:$0xf]
  %v984 = vld [vmem:[%s9 + $0xc] sm:$0xf]
  %v985 = vld [vmem:[%s9 + $0x10] sm:$0xf]
  %v986 = vld [vmem:[%s9 + $0x14] sm:$0xf]
  %v987 = vld [vmem:[%s9 + $0x18] sm:$0xf]
  %v988 = vld [vmem:[%s9 + $0x1c] sm:$0xf]
  %v989 = vld [vmem:[%s9 + $0x20] sm:$0xf]
  %v990 = vld [vmem:[%s9 + $0x24] sm:$0xf]
  %v991 = vld [vmem:[%s9 + $0x28] sm:$0xf]
  %v992 = vld [vmem:[%s9 + $0x2c] sm:$0xf]
  %v993 = vld [vmem:[%s9 + $0x30] sm:$0xf]
  %v994 = vld [vmem:[%s9 + $0x34] sm:$0xf]
  %v995 = vld [vmem:[%s9 + $0x38] sm:$0xf]
  %v996 = vld [vmem:[%s9 + $0x3c] sm:$0xf]
  %v997 = vld [vmem:[%s10] sm:$0x1]
  %v999 = vlaneseq
  %v1000 = vshrl.u32 %v999, 7
  %v1001 = vsub.s32 0, %v1000
  %v1002 = vrot.slane %v997, %v1001
  %v1020 = vunpack.c.l.b16 %v981
  %v1021 = vunpack.c.l.b16 %v982
  %v1022 = vunpack.c.l.b16 %v983
  %v1023 = vunpack.c.l.b16 %v984
  %v1024 = vunpack.c.l.b16 %v985
  %v1025 = vunpack.c.l.b16 %v986
  %v1026 = vunpack.c.l.b16 %v987
  %v1027 = vunpack.c.l.b16 %v988
  %v1028 = vunpack.c.l.b16 %v989
  %v1029 = vunpack.c.l.b16 %v990
  %v1030 = vunpack.c.l.b16 %v991
  %v1031 = vunpack.c.l.b16 %v992
  %v1032 = vunpack.c.l.b16 %v993
  %v1033 = vunpack.c.l.b16 %v994
  %v1034 = vunpack.c.l.b16 %v995
  %v1035 = vunpack.c.l.b16 %v996
  %v1036 = vpack.c.b16 %v1021, %v1020
  %v1037 = vpack.c.b16 %v1023, %v1022
  %v1038 = vpack.c.b16 %v1025, %v1024
  %v1039 = vpack.c.b16 %v1027, %v1026
  %v1040 = vpack.c.b16 %v1029, %v1028
  %v1041 = vpack.c.b16 %v1031, %v1030
  %v1042 = vpack.c.b16 %v1033, %v1032
  %v1043 = vpack.c.b16 %v1035, %v1034
  %1052 = vmatprep.subr.bf16.mxu0 0
  %1053 = vmatpush1.bf16.msra.mxu0 %v1043
  %1054 = vmatprep.subr.bf16.mxu0 0
  %1055 = vmatpush1.bf16.msra.mxu0 %v1042
  %1056 = vmatprep.subr.bf16.mxu0 0
  %1057 = vmatpush1.bf16.msra.mxu0 %v1041
  %1058 = vmatprep.subr.bf16.mxu0 0
  %1059 = vmatpush1.bf16.msra.mxu0 %v1040
  %1060 = vmatprep.subr.bf16.mxu0 0
  %1061 = vmatpush1.bf16.msra.mxu0 %v1039
  %1062 = vmatprep.subr.bf16.mxu0 0
  %1063 = vmatpush1.bf16.msra.mxu0 %v1038
  %1064 = vmatprep.subr.bf16.mxu0 0
  %1065 = vmatpush1.bf16.msra.mxu0 %v1037
  %1066 = vmatprep.subr.bf16.mxu0 0
  %1067 = vmatpush1.bf16.msra.mxu0 %v1036
  %1068 = vmatprep.subr.bf16.mxu0 0
  %1069 = vmatpush2.bf16.msra.mxu0 0
  %1070 = vmatprep.subr.bf16.mxu0 0
  %1071 = vmatpush2.bf16.msra.mxu0 0
  %1072 = vmatprep.subr.bf16.mxu0 0
  %1073 = vmatpush2.bf16.msra.mxu0 0
  %1074 = vmatprep.subr.bf16.mxu0 0
  %1075 = vmatpush2.bf16.msra.mxu0 0
  %1076 = vmatprep.subr.bf16.mxu0 0
  %1077 = vmatpush2.bf16.msra.mxu0 0
  %1078 = vmatprep.subr.bf16.mxu0 0
  %1079 = vmatpush2.bf16.msra.mxu0 0
  %1080 = vmatprep.subr.bf16.mxu0 0
  %1081 = vmatpush2.bf16.msra.mxu0 0
  %1082 = vmatprep.subr.bf16.mxu0 0
  %1083 = vmatpush2.bf16.msra.mxu0 0
  %1084 = vmatprep.mubr.bf16.mxu0 0
  %1085 = vmatmul.mubr.bf16.gmra.mxu0 %v980
  %v1086 = vpop.f32.mrf.mxu0
  %v1087 = vadd.f32 %v1002, %v1086
  %v1088 = vpop.f32.mrf.mxu0
  %v1089 = vpop.f32.mrf.mxu0
  %v1090 = vadd.f32 %v1002, %v1089
  %v1091 = vpop.f32.mrf.mxu0
  %1092 = vdwg.mxu0
  %1093 = vst.msk [vmem:[%s12] sm:$0xff] %vm90, %v1087
  %1094 = vst.msk [vmem:[%s12 + $0x8] sm:$0xff] %vm90, %v1090
  // Predicated region
  $region46: #{label_gcn_forward.1} parent=0 // pred_check
    _
  $region47: #{label_gcn_forward.1} parent=0 // pred_check_branch
    %1096 = sbr.rel (0) target = $region49
  $region48: #{label_gcn_forward.1} parent=0 // pred_region
    _
  $region49: #{label_gcn_forward.1} parent=0 // pred_fallthru
    _
  // Predicated region
  $region50: #{label_gcn_forward.1} parent=0 // pred_check
    _
  $region51: #{label_gcn_forward.1} parent=0 // pred_check_branch
    %1098 = sbr.rel (0) target = $region53
  $region52: #{label_gcn_forward.1} parent=0 // pred_region
    _
  $region53: #{label_gcn_forward.1} parent=0 // pred_fallthru
    _
  // Predicated region
  $region54: #{label_gcn_forward.1} parent=0 // pred_check
    _
  $region55: #{label_gcn_forward.1} parent=0 // pred_check_branch
    %1100 = sbr.rel (0) target = $region57
  $region56: #{label_gcn_forward.1} parent=0 // pred_region
    _
  $region57: #{label_gcn_forward.1} parent=0 // pred_fallthru
    _
  // Predicated region
  $region58: #{label_gcn_forward.1} parent=0 // pred_check
    _
  $region59: #{label_gcn_forward.1} parent=0 // pred_check_branch
    %1102 = sbr.rel (0) target = $region61
  $region60: #{label_gcn_forward.1} parent=0 // pred_region
    _
  $region61: #{label_gcn_forward.1} parent=0 // pred_fallthru
    _

</llo_original>
